<compile_context>
chip_gen: v6e
topology: v6e:2x2x1
jax: 0.10.0
libtpu: 0.0.40
codegen_flags: <defaults>
</compile_context>

<pallas_src>
import numpy as np
import jax
import jax.numpy as jnp
from jax.experimental import pallas as pl
from jax.experimental.pallas import tpu as pltpu


def _round_up(x, m):
    return ((x + m - 1) // m) * m


def net_kernel(x_ref, w_ref, bias_ref, q_ref):
    # x_ref    : [B, K_pad]      bf16  (flattened parameters ++ last_loss, 0-padded)
    # w_ref    : [K_pad, F_pad]  bf16  (folded fc1->fc2 weight ++ fc2 tail, 0-padded)
    # bias_ref : [1, F_pad]      f32   (b1 pushed through fc2, plus b2, 0-padded)
    # q_ref    : [B, F_pad]      f32
    q = jnp.dot(x_ref[...], w_ref[...], preferred_element_type=jnp.float32)
    q_ref[...] = q + bias_ref[...]


def fold_weights(w1, b1, w2, b2, L, P, Ll, K_pad, F_pad):
    """One-time fold of (fc1, fc2) into a single packed [K_pad, F_pad] weight
    plus an effective bias. In a DQN training loop this should be cached and
    recomputed only when w1/b1/w2/b2 change."""
    F_out = w2.shape[0]
    # w2a[i, l, f] = W2[f, i*L + l]  (fc2 block that multiplies fc1(slice i))
    w2a = w2[:, :L * L].T.reshape(L, L, F_out)
    # Fold fc1 into fc2: W_eff[i*P + p, f] = sum_l w1[l, p] * w2a[i, l, f]
    w_eff = jnp.einsum('lp,ilf->ipf', w1, w2a).reshape(L * P, F_out)
    # fc2 weight for the last_loss tail, transposed for right-multiplication.
    w2bt = w2[:, L * L:].T                                  # [Ll, F_out]
    # Folded bias: sum_i b1 @ w2a_i + b2
    bias_eff = b1 @ w2a.sum(axis=0) + b2                    # [F_out]

    K = L * P + Ll
    w_stack = jnp.concatenate([w_eff, w2bt], axis=0)        # [K, F_out]
    w_pad = jnp.pad(w_stack, ((0, K_pad - K), (0, F_pad - F_out)))
    bias_pad = jnp.pad(bias_eff, (0, F_pad - F_out)).reshape(1, F_pad)
    return w_pad.astype(jnp.bfloat16), bias_pad.astype(jnp.float32)


@jax.jit
def net_forward(parameters, last_loss, w1, b1, w2, b2):
    """parameters: [B, L, P], last_loss: [B, Ll],
    w1: [L, P], b1: [L], w2: [F_out, L*L + Ll], b2: [F_out]."""
    B, L, P = parameters.shape
    Ll = last_loss.shape[1]
    F_out = w2.shape[0]
    F_pad = _round_up(F_out, 128)            # lane-dense output width
    K = L * P + Ll
    K_pad = _round_up(K, 128)                # lane-dense activation width

    # Weight fold (fused into this jit; cacheable across calls if desired).
    w_pad, bias_pad = fold_weights(w1, b1, w2, b2, L, P, Ll, K_pad, F_pad)

    # Single fused activation: [flatten(parameters) ++ last_loss], zero-padded
    # on K, cast to bf16.
    x = jnp.concatenate([parameters.reshape(B, L * P), last_loss], axis=1)
    x_pad = jnp.pad(x, ((0, 0), (0, K_pad - K))).astype(jnp.bfloat16)

    vmem = pl.BlockSpec(memory_space=pltpu.MemorySpace.VMEM)
    q_pad = pl.pallas_call(
        net_kernel,
        out_shape=jax.ShapeDtypeStruct((B, F_pad), jnp.float32),
        in_specs=[vmem, vmem, vmem],
        out_specs=vmem,
    )(x_pad, w_pad, bias_pad)

    # Slice fuses inside this jit (no extra HBM round trip dispatch).
    return q_pad[:, :F_out]
    # TODO(synk): if B ever scales to >=hundreds of rows, add a grid over the
    # batch dim with dimension_semantics=("parallel",) and constant
    # index_maps on the weight/bias so they stay VMEM-resident across steps.


def net_forward_ref(parameters, last_loss, w1, b1, w2, b2):
    """Pure-JAX reference mirroring the PyTorch forward exactly (f32)."""
    B, L, P = parameters.shape
    parameter_lst = [parameters[:, i, :] @ w1.T + b1 for i in range(L)]
    parameter_layer = jnp.concatenate(parameter_lst, axis=1)
    x = jnp.concatenate([parameter_layer, last_loss], axis=1)
    return x @ w2.T + b2


if __name__ == "__main__":
    # Small shapes consistent with the module:
    #   parameter_dim=32, loss_dim=8, num_users=8
    #   fc2 input = loss_dim*(num_users+1) = 72 -> last_loss is [B, 8]
    B = 2
    parameter_dim = 32
    loss_dim = 8
    num_users = 8
    fc2_in = loss_dim * (num_users + 1)
    last_loss_dim = fc2_in - loss_dim * loss_dim   # = 8
    fc2_out = 100

    key = jax.random.PRNGKey(0)
    k1, k2, k3, k4, k5, k6 = jax.random.split(key, 6)

    parameters = jax.random.normal(k1, (B, loss_dim, parameter_dim), jnp.float32)
    last_loss = jax.random.normal(k2, (B, last_loss_dim), jnp.float32)

    # Deterministic parameter init (uniform in +/- 1/sqrt(fan_in), like nn.Linear).
    lim1 = 1.0 / np.sqrt(parameter_dim)
    lim2 = 1.0 / np.sqrt(fc2_in)
    w1 = jax.random.uniform(k3, (loss_dim, parameter_dim), jnp.float32, -lim1, lim1)
    b1 = jax.random.uniform(k4, (loss_dim,), jnp.float32, -lim1, lim1)
    w2 = jax.random.uniform(k5, (fc2_out, fc2_in), jnp.float32, -lim2, lim2)
    b2 = jax.random.uniform(k6, (fc2_out,), jnp.float32, -lim2, lim2)

    q = net_forward(parameters, last_loss, w1, b1, w2, b2)
    q = jax.block_until_ready(q)

    q_ref = net_forward_ref(parameters, last_loss, w1, b1, w2, b2)
    # bf16 activations/weights (f32 accumulate): loosened tolerance vs the
    # pure-f32 reference.
    np.testing.assert_allclose(np.asarray(q), np.asarray(q_ref),
                               rtol=2e-2, atol=2e-2)

    print("KERNEL_OK")
</pallas_src>

<mosaic_0001>
module attributes {stable_mosaic.version = 11 : i64} {
  func.func @net_kernel(%arg0: memref<2x384xbf16, #tpu.memory_space<vmem>>, %arg1: memref<384x128xbf16, #tpu.memory_space<vmem>>, %arg2: memref<1x128xf32, #tpu.memory_space<vmem>>, %arg3: memref<2x128xf32, #tpu.memory_space<vmem>>) attributes {dimension_semantics = [], scalar_prefetch = 0 : i64, scratch_operands = 0 : i64, tpu.core_type = #tpu.core_type<tc>} {
    %c0 = arith.constant 0 : index
    %c0_0 = arith.constant 0 : index
    %0 = vector.load %arg0[%c0, %c0_0] : memref<2x384xbf16, #tpu.memory_space<vmem>>, vector<2x384xbf16>
    %c0_1 = arith.constant 0 : index
    %c0_2 = arith.constant 0 : index
    %1 = vector.load %arg1[%c0_1, %c0_2] : memref<384x128xbf16, #tpu.memory_space<vmem>>, vector<384x128xbf16>
    %cst = arith.constant dense<0.000000e+00> : vector<2x128xf32>
    %2 = tpu.matmul %0, %1, %cst {dimension_numbers = #tpu.dot_dimension_numbers<[1], [0], [0], [1], [0, 0, 1, 1], [], []>} : vector<2x384xbf16>, vector<384x128xbf16>, vector<2x128xf32> -> vector<2x128xf32>
    %c0_3 = arith.constant 0 : index
    %c0_4 = arith.constant 0 : index
    %3 = vector.load %arg2[%c0_3, %c0_4] : memref<1x128xf32, #tpu.memory_space<vmem>>, vector<1x128xf32>
    %4 = vector.broadcast %3 : vector<1x128xf32> to vector<2x128xf32>
    %5 = arith.addf %2, %4 : vector<2x128xf32>
    %c0_5 = arith.constant 0 : index
    %c0_6 = arith.constant 0 : index
    %6 = vector.load %arg3[%c0_5, %c0_6] : memref<2x128xf32, #tpu.memory_space<vmem>>, vector<2x128xf32>
    tpu.vector_store %arg3[%c0_5, %c0_6], %5 {strides = array<i32>} : memref<2x128xf32, #tpu.memory_space<vmem>>, vector<2x128xf32>,
    return
  }
}

</mosaic_0001>

<llo_original>
// kernel: net_forward.1
$region0: #{net_forward.1}
  #allocation0 [shape = 'u32[]', space=smem, size = 0x4, offset = 0x4, fixed_abs, tag = 'smem constant byte address 0x4 - core index']
  #allocation1 [shape = 'u32[144,128]{1,0:T(1,128)}', space=vmem, size = 0x12000, scoped, tag = 'internal scratch']
  %s0 = inlined_call_operand.vmem [shape: bf16[2,384], index: 0, kind: input, shape index: {}]
  %s1 = inlined_call_operand.vmem [shape: bf16[384,128], index: 1, kind: input, shape index: {}]
  %s2 = inlined_call_operand.vmem [shape: f32[1,128], index: 2, kind: input, shape index: {}]
  %s3 = inlined_call_operand.hbm [shape: f32[2,128], index: 3, kind: output, shape index: {}]
  %s4 = sld [smem:[#allocation0]]
  $region22: #{net_forward.1} parent=0
    _
  %s6 = ssub.s32 1, %s4
  %s7 = scalar_select 0, %s6, %s4
  $region1: #{net_forward.1} parent=0
    #allocation2 [shape = 'u8[1024]{0}', space=vmem, size = 0x400, scoped, tag = 'output window, operand 0, single buffered']
    #allocation3 [shape = 's32[1]{0}', space=sflag, size = 0x4, scoped, tag = 'scoped memory for net_forward.1']
    %8 = vsyncpa [#allocation3], 0
    // Predicated region
    $region2: #{net_forward.1} parent=1 // pred_check
      _
    $region3: #{net_forward.1} parent=1 // pred_check_branch
      %10 = sbr.rel (0) target = $region5
    $region4: #{net_forward.1} parent=1 // pred_region
      _
    $region5: #{net_forward.1} parent=1 // pred_fallthru
      _
    // Predicated region
    $region6: #{net_forward.1} parent=1 // pred_check
      _
    $region7: #{net_forward.1} parent=1 // pred_check_branch
      %12 = sbr.rel (0) target = $region9
    $region8: #{net_forward.1} parent=1 // pred_region
      _
    $region9: #{net_forward.1} parent=1 // pred_fallthru
      _
    // Predicated region
    $region10: #{net_forward.1} parent=1 // pred_check
      _
    $region11: #{net_forward.1} parent=1 // pred_check_branch
      %14 = sbr.rel (0) target = $region13
    $region12: #{net_forward.1} parent=1 // pred_region
      _
    $region13: #{net_forward.1} parent=1 // pred_fallthru
      _
    %v16 = vld [vmem:[%s0] sm:$0x7]
    %v17 = vld [vmem:[%s1] sm:$0xf]
    %v18 = vld [vmem:[%s1 + $0x4] sm:$0xf]
    %v19 = vld [vmem:[%s1 + $0x8] sm:$0xf]
    %v20 = vld [vmem:[%s1 + $0xc] sm:$0xf]
    %v21 = vld [vmem:[%s1 + $0x10] sm:$0xf]
    %v22 = vld [vmem:[%s1 + $0x14] sm:$0xf]
    %v23 = vld [vmem:[%s1 + $0x18] sm:$0xf]
    %v24 = vld [vmem:[%s1 + $0x1c] sm:$0xf]
    %v25 = vld [vmem:[%s1 + $0x20] sm:$0xf]
    %v26 = vld [vmem:[%s1 + $0x24] sm:$0xf]
    %v27 = vld [vmem:[%s1 + $0x28] sm:$0xf]
    %v28 = vld [vmem:[%s1 + $0x2c] sm:$0xf]
    %v29 = vld [vmem:[%s1 + $0x30] sm:$0xf]
    %v30 = vld [vmem:[%s1 + $0x34] sm:$0xf]
    %v31 = vld [vmem:[%s1 + $0x38] sm:$0xf]
    %v32 = vld [vmem:[%s1 + $0x3c] sm:$0xf]
    %v33 = vld [vmem:[%s1 + $0x40] sm:$0xf]
    %v34 = vld [vmem:[%s1 + $0x44] sm:$0xf]
    %v35 = vld [vmem:[%s1 + $0x48] sm:$0xf]
    %v36 = vld [vmem:[%s1 + $0x4c] sm:$0xf]
    %v37 = vld [vmem:[%s1 + $0x50] sm:$0xf]
    %v38 = vld [vmem:[%s1 + $0x54] sm:$0xf]
    %v39 = vld [vmem:[%s1 + $0x58] sm:$0xf]
    %v40 = vld [vmem:[%s1 + $0x5c] sm:$0xf]
    %v41 = vld [vmem:[%s1 + $0x60] sm:$0xf]
    %v42 = vld [vmem:[%s1 + $0x64] sm:$0xf]
    %v43 = vld [vmem:[%s1 + $0x68] sm:$0xf]
    %v44 = vld [vmem:[%s1 + $0x6c] sm:$0xf]
    %v45 = vld [vmem:[%s1 + $0x70] sm:$0xf]
    %v46 = vld [vmem:[%s1 + $0x74] sm:$0xf]
    %v47 = vld [vmem:[%s1 + $0x78] sm:$0xf]
    %v48 = vld [vmem:[%s1 + $0x7c] sm:$0xf]
    %v49 = vld [vmem:[%s1 + $0x80] sm:$0xf]
    %v50 = vld [vmem:[%s1 + $0x84] sm:$0xf]
    %v51 = vld [vmem:[%s1 + $0x88] sm:$0xf]
    %v52 = vld [vmem:[%s1 + $0x8c] sm:$0xf]
    %v53 = vld [vmem:[%s1 + $0x90] sm:$0xf]
    %v54 = vld [vmem:[%s1 + $0x94] sm:$0xf]
    %v55 = vld [vmem:[%s1 + $0x98] sm:$0xf]
    %v56 = vld [vmem:[%s1 + $0x9c] sm:$0xf]
    %v57 = vld [vmem:[%s1 + $0xa0] sm:$0xf]
    %v58 = vld [vmem:[%s1 + $0xa4] sm:$0xf]
    %v59 = vld [vmem:[%s1 + $0xa8] sm:$0xf]
    %v60 = vld [vmem:[%s1 + $0xac] sm:$0xf]
    %v61 = vld [vmem:[%s1 + $0xb0] sm:$0xf]
    %v62 = vld [vmem:[%s1 + $0xb4] sm:$0xf]
    %v63 = vld [vmem:[%s1 + $0xb8] sm:$0xf]
    %v64 = vld [vmem:[%s1 + $0xbc] sm:$0xf]
    %v65 = vld [vmem:[%s2] sm:$0x1]
    %v67 = vlaneseq
    %v68 = vshrl.u32 %v67, 7
    %v69 = vsub.s32 0, %v68
    %v70 = vrot.slane %v65, %v69
    %v74 = vunpack.c.l.s4 1966171168
    %v75 = vunpack.c.0.s8 %v74
    %v76 = vlaneseq
    %v77 = vshrl.u32 %v76, 7
    %v78 = vsub.s32 %v75, %v77
    %v79 = vrot.slane %v16, %v78
    %v80 = vcombine.high %v79, %v79
    %v82 = vunpack.c.l.s4 1966171168
    %v83 = vunpack.c.0.s8 %v82
    %v84 = vlaneseq
    %v85 = vshrl.u32 %v84, 7
    %v86 = vsub.s32 %v83, %v85
    %v87 = vrot.slane %v79, %v86
    %v89 = vunpack.c.l.s4 1966171168
    %v90 = vunpack.c.0.s8 %v89
    %v91 = vlaneseq
    %v92 = vshrl.u32 %v91, 7
    %v93 = vsub.s32 %v90, %v92
    %v94 = vrot.slane %v80, %v93
    %v95 = vcombine.high %v87, %v87
    %v147 = vunpack.c.l.b16 %v17
    %v148 = vunpack.c.l.b16 %v18
    %v149 = vunpack.c.l.b16 %v19
    %v150 = vunpack.c.l.b16 %v20
    %v151 = vunpack.c.l.b16 %v21
    %v152 = vunpack.c.l.b16 %v22
    %v153 = vunpack.c.l.b16 %v23
    %v154 = vunpack.c.l.b16 %v24
    %v155 = vunpack.c.l.b16 %v25
    %v156 = vunpack.c.l.b16 %v26
    %v157 = vunpack.c.l.b16 %v27
    %v158 = vunpack.c.l.b16 %v28
    %v159 = vunpack.c.l.b16 %v29
    %v160 = vunpack.c.l.b16 %v30
    %v161 = vunpack.c.l.b16 %v31
    %v162 = vunpack.c.l.b16 %v32
    %v163 = vunpack.c.l.b16 %v33
    %v164 = vunpack.c.l.b16 %v34
    %v165 = vunpack.c.l.b16 %v35
    %v166 = vunpack.c.l.b16 %v36
    %v167 = vunpack.c.l.b16 %v37
    %v168 = vunpack.c.l.b16 %v38
    %v169 = vunpack.c.l.b16 %v39
    %v170 = vunpack.c.l.b16 %v40
    %v171 = vunpack.c.l.b16 %v41
    %v172 = vunpack.c.l.b16 %v42
    %v173 = vunpack.c.l.b16 %v43
    %v174 = vunpack.c.l.b16 %v44
    %v175 = vunpack.c.l.b16 %v45
    %v176 = vunpack.c.l.b16 %v46
    %v177 = vunpack.c.l.b16 %v47
    %v178 = vunpack.c.l.b16 %v48
    %v179 = vunpack.c.l.b16 %v49
    %v180 = vunpack.c.l.b16 %v50
    %v181 = vunpack.c.l.b16 %v51
    %v182 = vunpack.c.l.b16 %v52
    %v183 = vunpack.c.l.b16 %v53
    %v184 = vunpack.c.l.b16 %v54
    %v185 = vunpack.c.l.b16 %v55
    %v186 = vunpack.c.l.b16 %v56
    %v187 = vunpack.c.l.b16 %v57
    %v188 = vunpack.c.l.b16 %v58
    %v189 = vunpack.c.l.b16 %v59
    %v190 = vunpack.c.l.b16 %v60
    %v191 = vunpack.c.l.b16 %v61
    %v192 = vunpack.c.l.b16 %v62
    %v193 = vunpack.c.l.b16 %v63
    %v194 = vunpack.c.l.b16 %v64
    %v195 = vpack.c.b16 %v148, %v147
    %v196 = vpack.c.b16 %v150, %v149
    %v197 = vpack.c.b16 %v152, %v151
    %v198 = vpack.c.b16 %v154, %v153
    %v199 = vpack.c.b16 %v156, %v155
    %v200 = vpack.c.b16 %v158, %v157
    %v201 = vpack.c.b16 %v160, %v159
    %v202 = vpack.c.b16 %v162, %v161
    %v203 = vpack.c.b16 %v164, %v163
    %v204 = vpack.c.b16 %v166, %v165
    %v205 = vpack.c.b16 %v168, %v167
    %v206 = vpack.c.b16 %v170, %v169
    %v207 = vpack.c.b16 %v172, %v171
    %v208 = vpack.c.b16 %v174, %v173
    %v209 = vpack.c.b16 %v176, %v175
    %v210 = vpack.c.b16 %v178, %v177
    %v211 = vpack.c.b16 %v180, %v179
    %v212 = vpack.c.b16 %v182, %v181
    %v213 = vpack.c.b16 %v184, %v183
    %v214 = vpack.c.b16 %v186, %v185
    %v215 = vpack.c.b16 %v188, %v187
    %v216 = vpack.c.b16 %v190, %v189
    %v217 = vpack.c.b16 %v192, %v191
    %v218 = vpack.c.b16 %v194, %v193
    %243 = vmatprep.subr.bf16.mxu0 0
    %244 = vmatpush1.bf16.msra.mxu0 %v202
    %245 = vmatprep.subr.bf16.mxu0 0
    %246 = vmatpush1.bf16.msra.mxu0 %v201
    %247 = vmatprep.subr.bf16.mxu0 0
    %248 = vmatpush1.bf16.msra.mxu0 %v200
    %249 = vmatprep.subr.bf16.mxu0 0
    %250 = vmatpush1.bf16.msra.mxu0 %v199
    %251 = vmatprep.subr.bf16.mxu0 0
    %252 = vmatpush1.bf16.msra.mxu0 %v198
    %253 = vmatprep.subr.bf16.mxu0 0
    %254 = vmatpush1.bf16.msra.mxu0 %v197
    %255 = vmatprep.subr.bf16.mxu0 0
    %256 = vmatpush1.bf16.msra.mxu0 %v196
    %257 = vmatprep.subr.bf16.mxu0 0
    %258 = vmatpush1.bf16.msra.mxu0 %v195
    %259 = vmatprep.subr.bf16.mxu0 0
    %260 = vmatpush2.bf16.msra.mxu0 %v210
    %261 = vmatprep.subr.bf16.mxu0 0
    %262 = vmatpush2.bf16.msra.mxu0 %v209
    %263 = vmatprep.subr.bf16.mxu0 0
    %264 = vmatpush2.bf16.msra.mxu0 %v208
    %265 = vmatprep.subr.bf16.mxu0 0
    %266 = vmatpush2.bf16.msra.mxu0 %v207
    %267 = vmatprep.subr.bf16.mxu0 0
    %268 = vmatpush2.bf16.msra.mxu0 %v206
    %269 = vmatprep.subr.bf16.mxu0 0
    %270 = vmatpush2.bf16.msra.mxu0 %v205
    %271 = vmatprep.subr.bf16.mxu0 0
    %272 = vmatpush2.bf16.msra.mxu0 %v204
    %273 = vmatprep.subr.bf16.mxu0 0
    %274 = vmatpush2.bf16.msra.mxu0 %v203
    %275 = vmatprep.mubr.bf16.mxu0 %v94
    %276 = vmatmul.mubr.bf16.gmra.mxu0 %v87
    %v277 = vpop.f32.mrf.mxu0
    %v278 = vadd.f32 %v70, %v277
    %v279 = vpop.f32.mrf.mxu0
    %v280 = vpop.f32.mrf.mxu0
    %v281 = vpop.f32.mrf.mxu0
    %282 = vdwg.mxu0
    %283 = vmatprep.subr.bf16.mxu0 0
    %284 = vmatpush1.bf16.msra.mxu0 %v218
    %285 = vmatprep.subr.bf16.mxu0 0
    %286 = vmatpush1.bf16.msra.mxu0 %v217
    %287 = vmatprep.subr.bf16.mxu0 0
    %288 = vmatpush1.bf16.msra.mxu0 %v216
    %289 = vmatprep.subr.bf16.mxu0 0
    %290 = vmatpush1.bf16.msra.mxu0 %v215
    %291 = vmatprep.subr.bf16.mxu0 0
    %292 = vmatpush1.bf16.msra.mxu0 %v214
    %293 = vmatprep.subr.bf16.mxu0 0
    %294 = vmatpush1.bf16.msra.mxu0 %v213
    %295 = vmatprep.subr.bf16.mxu0 0
    %296 = vmatpush1.bf16.msra.mxu0 %v212
    %297 = vmatprep.subr.bf16.mxu0 0
    %298 = vmatpush1.bf16.msra.mxu0 %v211
    %299 = vmatprep.subr.bf16.mxu0 0
    %300 = vmatpush2.bf16.msra.mxu0 0
    %301 = vmatprep.subr.bf16.mxu0 0
    %302 = vmatpush2.bf16.msra.mxu0 0
    %303 = vmatprep.subr.bf16.mxu0 0
    %304 = vmatpush2.bf16.msra.mxu0 0
    %305 = vmatprep.subr.bf16.mxu0 0
    %306 = vmatpush2.bf16.msra.mxu0 0
    %307 = vmatprep.subr.bf16.mxu0 0
    %308 = vmatpush2.bf16.msra.mxu0 0
    %309 = vmatprep.subr.bf16.mxu0 0
    %310 = vmatpush2.bf16.msra.mxu0 0
    %311 = vmatprep.subr.bf16.mxu0 0
    %312 = vmatpush2.bf16.msra.mxu0 0
    %313 = vmatprep.subr.bf16.mxu0 0
    %314 = vmatpush2.bf16.msra.mxu0 0
    %315 = vmatprep.mubr.bf16.mxu0 0
    %316 = vmatmul.mubr.bf16.gmra.mxu0 %v95
    %v317 = vpop.f32.mrf.mxu0
    %v318 = vadd.f32 %v278, %v317
    %v319 = vpop.f32.mrf.mxu0
    %v320 = vpop.f32.mrf.mxu0
    %v321 = vpop.f32.mrf.mxu0
    %322 = vdwg.mxu0
    %323 = vst [vmem:[#allocation2] sm:$0x3] %v318
    // Predicated region
    $region14: #{net_forward.1} parent=1 // pred_check
      _
    $region15: #{net_forward.1} parent=1 // pred_check_branch
      %325 = sbr.rel (0) target = $region17
    $region16: #{net_forward.1} parent=1 // pred_region
      %s327 = ssub.s32 32, 32
      %328 = vsyncadd [#allocation3], %s327
      %s330 = sshll.u32 [#allocation2], 4
      %s331 = int_to_ptr.vmem [resolvable:$true] %s330
      %333 = dma.vmem_to_hbm [thread:$0]  %s331, 32, %s3, [#allocation3]
    $region17: #{net_forward.1} parent=1 // pred_fallthru
      _
    // Predicated region
    $region18: #{net_forward.1} parent=1 // pred_check
      _
    $region19: #{net_forward.1} parent=1 // pred_check_branch
      %335 = sbr.rel (0) target = $region21
    $region20: #{net_forward.1} parent=1 // pred_region
      %336 = dma.done [#allocation3], 32
    $region21: #{net_forward.1} parent=1 // pred_fallthru
      _
    %337 = vsyncpa [#allocation3], 1

</llo_original>
